<compile_context>
chip_gen: v6e
topology: v6e:2x2x1
jax: 0.10.0
libtpu: 0.0.40
codegen_flags: <defaults>
</compile_context>

<pallas_src>
import math
from functools import partial

import jax
import jax.numpy as jnp
from jax.experimental import pallas as pl
from jax.experimental.pallas import tpu as pltpu


# ----------------------------------------------------------------------------
# small helpers
# ----------------------------------------------------------------------------
def _round_up(x, m):
    return (x + m - 1) // m * m


def _pick_tile(n, cap=4096):
    """Largest multiple of 8 <= cap that divides n (falls back to n)."""
    cap = min(cap, n)
    t = cap - (cap % 8)
    while t >= 8:
        if n % t == 0:
            return t
        t -= 8
    return n


def _pick_tile_m(m, cap=1024):
    """M-tile: prefer an exact divisor of m (no padded rows), else pad to cap."""
    if m <= cap:
        return _round_up(m, 8)
    t = cap - (cap % 8)
    while t >= 256:
        if m % t == 0:
            return t
        t -= 8
    return cap


# ----------------------------------------------------------------------------
# Pallas matmul (im2col hot path): bf16 MXU inputs, f32 accumulate + fused epilogue
# (bias + LeakyReLU/Swish + optional residual add), bf16/f32 output.
# ----------------------------------------------------------------------------
def _mm_kernel(act, has_residual):
    def kernel(*refs):
        if has_residual:
            a_ref, b_ref, bias_ref, r_ref, o_ref = refs
        else:
            a_ref, b_ref, bias_ref, o_ref = refs
        acc = jnp.dot(a_ref[...], b_ref[...], preferred_element_type=jnp.float32)
        acc = acc + bias_ref[...]
        if act == "leaky":          # LeakyReLU(0.1)
            acc = jnp.where(acc >= 0, acc, 0.1 * acc)
        elif act == "swish":        # x * sigmoid(x)
            acc = acc * jax.nn.sigmoid(acc)
        if has_residual:
            acc = acc + r_ref[...].astype(jnp.float32)
        o_ref[...] = acc.astype(o_ref.dtype)
    return kernel


@partial(jax.jit, static_argnames=("act", "tile_m", "out_dtype"))
def pallas_matmul(a, b, bias=None, act="none", residual=None,
                  out_dtype=jnp.bfloat16, tile_m=1024):
    """a: [M, K], b: [K, N] -> [M, N] (+bias, +activation, +residual epilogue)."""
    M, K = a.shape
    _, N = b.shape
    Np = _round_up(N, 128)                      # lane-dense output columns
    bp = b.astype(jnp.bfloat16)
    if Np != N:
        bp = jnp.pad(bp, ((0, 0), (0, Np - N)))
    if bias is None:
        bias2 = jnp.zeros((1, Np), jnp.float32)
    else:
        bias2 = jnp.pad(bias.astype(jnp.float32), (0, Np - N)).reshape(1, Np)
    tm = _pick_tile_m(M, tile_m)
    Mp = _round_up(M, tm)
    ap = a.astype(jnp.bfloat16)
    if Mp != M:
        ap = jnp.pad(ap, ((0, Mp - M), (0, 0)))
    has_res = residual is not None
    operands = [ap, bp, bias2]
    in_specs = [
        pl.BlockSpec((tm, K), lambda i: (i, 0)),
        pl.BlockSpec((K, Np), lambda i: (0, 0)),
        pl.BlockSpec((1, Np), lambda i: (0, 0)),
    ]
    if has_res:
        rp = residual
        if rp.shape != (Mp, Np):
            rp = jnp.pad(rp, ((0, Mp - M), (0, Np - N)))
        operands.append(rp)
        in_specs.append(pl.BlockSpec((tm, Np), lambda i: (i, 0)))
    out = pl.pallas_call(
        _mm_kernel(act, has_res),
        out_shape=jax.ShapeDtypeStruct((Mp, Np), out_dtype),
        grid=(Mp // tm,),
        in_specs=in_specs,
        out_specs=pl.BlockSpec((tm, Np), lambda i: (i, 0)),
        compiler_params=pltpu.CompilerParams(
            dimension_semantics=("parallel",),
            vmem_limit_bytes=40 * 1024 * 1024),
    )(*operands)
    if Mp != M or Np != N:
        out = out[:M, :N]
    return out


# ----------------------------------------------------------------------------
# GroupNorm (NHWC): pass 1 per-channel sum/sumsq reduction, pass 2 normalize(+Swish)
# bf16 in / bf16 out, f32 statistics in-kernel.
# ----------------------------------------------------------------------------
def _gn_stats_kernel(x_ref, s_ref, ss_ref):
    x = x_ref[0].astype(jnp.float32)                     # (th, C)
    s = jnp.sum(x, axis=0, keepdims=True)                # (1, C)
    ss = jnp.sum(x * x, axis=0, keepdims=True)           # (1, C)

    @pl.when(pl.program_id(1) == 0)
    def _():
        s_ref[0] = s
        ss_ref[0] = ss

    @pl.when(pl.program_id(1) != 0)
    def _():
        s_ref[0] = s_ref[0] + s
        ss_ref[0] = ss_ref[0] + ss


def _gn_apply_kernel(swish):
    def kernel(x_ref, sc_ref, sh_ref, o_ref):
        y = x_ref[0].astype(jnp.float32) * sc_ref[0] + sh_ref[0]
        if swish:
            y = y * jax.nn.sigmoid(y)
        o_ref[0] = y.astype(o_ref.dtype)
    return kernel


@partial(jax.jit, static_argnames=("num_groups", "eps", "swish"))
def group_norm(x, gamma, beta, num_groups=32, eps=1e-5, swish=False):
    """x: [B, H, W, C] NHWC; PyTorch GroupNorm semantics (biased variance)."""
    B, H, W, C = x.shape
    G = num_groups
    Cg = C // G
    HW = H * W
    x3 = x.reshape(B, HW, C)
    th = _pick_tile(HW, 4096)
    stats_spec = pl.BlockSpec((1, 1, C), lambda b, i: (b, 0, 0))
    s_sum, s_sq = pl.pallas_call(
        _gn_stats_kernel,
        out_shape=(jax.ShapeDtypeStruct((B, 1, C), jnp.float32),
                   jax.ShapeDtypeStruct((B, 1, C), jnp.float32)),
        grid=(B, HW // th),
        in_specs=[pl.BlockSpec((1, th, C), lambda b, i: (b, i, 0))],
        out_specs=(stats_spec, stats_spec),
        compiler_params=pltpu.CompilerParams(
            dimension_semantics=("parallel", "arbitrary")),
    )(x3)
    n = float(HW * Cg)
    gsum = s_sum[:, 0, :].reshape(B, G, Cg).sum(-1)      # [B, G]
    gsq = s_sq[:, 0, :].reshape(B, G, Cg).sum(-1)
    mean = gsum / n
    var = gsq / n - mean * mean
    rstd = jax.lax.rsqrt(var + eps)
    mean_c = jnp.repeat(mean, Cg, axis=1)                # [B, C]
    rstd_c = jnp.repeat(rstd, Cg, axis=1)
    scale = gamma[None, :].astype(jnp.float32) * rstd_c
    shift = beta[None, :].astype(jnp.float32) - mean_c * scale
    y = pl.pallas_call(
        _gn_apply_kernel(swish),
        out_shape=jax.ShapeDtypeStruct((B, HW, C), jnp.bfloat16),
        grid=(B, HW // th),
        in_specs=[
            pl.BlockSpec((1, th, C), lambda b, i: (b, i, 0)),
            pl.BlockSpec((1, 1, C), lambda b, i: (b, 0, 0)),
            pl.BlockSpec((1, 1, C), lambda b, i: (b, 0, 0)),
        ],
        out_specs=pl.BlockSpec((1, th, C), lambda b, i: (b, i, 0)),
        compiler_params=pltpu.CompilerParams(
            dimension_semantics=("parallel", "parallel")),
    )(x3, scale.reshape(B, 1, C), shift.reshape(B, 1, C))
    return y.reshape(B, H, W, C)


# ----------------------------------------------------------------------------
# Flash-style attention: online softmax, KV-tiled, bf16 MXU inputs, bf16 output
# ----------------------------------------------------------------------------
_NEG = -1e30


def _flash_attn_kernel(scale, true_len, tk, mask_needed):
    def kernel(q_ref, k_ref, v_ref, o_ref, m_sc, l_sc, acc_sc):
        kvi = pl.program_id(2)

        @pl.when(kvi == 0)
        def _():
            m_sc[...] = jnp.full_like(m_sc, _NEG)
            l_sc[...] = jnp.zeros_like(l_sc)
            acc_sc[...] = jnp.zeros_like(acc_sc)

        q = q_ref[0]                                  # (tq, Cp) bf16
        k = k_ref[0]                                  # (tk, Cp) bf16
        s = jax.lax.dot_general(q, k, (((1,), (1,)), ((), ())),
                                preferred_element_type=jnp.float32) * scale
        if mask_needed:
            col = jax.lax.broadcasted_iota(jnp.int32, s.shape, 1) + kvi * tk
            s = jnp.where(col < true_len, s, _NEG)
        m_prev = m_sc[...]
        m_new = jnp.maximum(m_prev, jnp.max(s, axis=-1, keepdims=True))
        alpha = jnp.exp(m_prev - m_new)
        p = jnp.exp(s - m_new)
        l_sc[...] = alpha * l_sc[...] + jnp.sum(p, axis=-1, keepdims=True)
        acc_sc[...] = alpha * acc_sc[...] + jnp.dot(
            p.astype(v_ref.dtype), v_ref[0], preferred_element_type=jnp.float32)
        m_sc[...] = m_new

        @pl.when(kvi == pl.num_programs(2) - 1)
        def _():
            o_ref[0] = (acc_sc[...] *
                        pl.reciprocal(l_sc[...], approx=True)).astype(o_ref.dtype)
    return kernel


@partial(jax.jit, static_argnames=("scale", "tile_q"))
def pallas_attention(q, k, v, scale, tile_q=256):
    """q, k, v: [B, L, C] -> softmax(q k^T * scale) v, [B, L, C] bf16."""
    B, L, C = q.shape
    Cp = _round_up(C, 128)

    def prep(a):
        a = a.astype(jnp.bfloat16)
        if Cp != C:
            a = jnp.pad(a, ((0, 0), (0, 0), (0, Cp - C)))
        return a

    qb, kb, vb = prep(q), prep(k), prep(v)
    tq = min(tile_q, _round_up(L, 8))
    Lq = _round_up(L, tq)
    if Lq != L:
        qb = jnp.pad(qb, ((0, 0), (0, Lq - L), (0, 0)))
    tk = None
    for cand in (1024, 896, 768, 640, 512, 384, 256, 128):
        if cand <= L and L % cand == 0:
            tk = cand
            break
    if tk is None:
        tk = min(512, _round_up(L, 128))
    Lk = _round_up(L, tk)
    if Lk != L:
        kb = jnp.pad(kb, ((0, 0), (0, Lk - L), (0, 0)))
        vb = jnp.pad(vb, ((0, 0), (0, Lk - L), (0, 0)))
    mask_needed = Lk != L

    out = pl.pallas_call(
        _flash_attn_kernel(scale, L, tk, mask_needed),
        out_shape=jax.ShapeDtypeStruct((B, Lq, Cp), jnp.bfloat16),
        grid=(B, Lq // tq, Lk // tk),
        in_specs=[
            pl.BlockSpec((1, tq, Cp), lambda b, i, j: (b, i, 0)),
            pl.BlockSpec((1, tk, Cp), lambda b, i, j: (b, j, 0)),
            pl.BlockSpec((1, tk, Cp), lambda b, i, j: (b, j, 0)),
        ],
        out_specs=pl.BlockSpec((1, tq, Cp), lambda b, i, j: (b, i, 0)),
        scratch_shapes=[
            pltpu.VMEM((tq, 1), jnp.float32),
            pltpu.VMEM((tq, 1), jnp.float32),
            pltpu.VMEM((tq, Cp), jnp.float32),
        ],
        compiler_params=pltpu.CompilerParams(
            dimension_semantics=("parallel", "parallel", "arbitrary")),
    )(qb, kb, vb)
    return out[:, :L, :C]


# ----------------------------------------------------------------------------
# Convolutions on top of the Pallas matmul (NHWC, bf16 im2col in fused glue)
# ----------------------------------------------------------------------------
# TODO(synk): im2col patches are still materialized in HBM (KhKw-fold read duplication);
#             an in-kernel halo-sliced conv would cut that but risks Mosaic layout rejects.
@partial(jax.jit, static_argnames=("stride", "padding", "dilation", "act", "out_dtype"))
def conv2d(x, p, stride=(1, 1), padding=(0, 0), dilation=(1, 1), act="none",
           residual=None, out_dtype=jnp.bfloat16):
    """x: [B, H, W, Cin] NHWC; p['w']: [Cout, Cin, Kh, Kw]; p['wm']: [Kh*Kw*Cin, Cout].
    residual (optional): [B, Ho, Wo, Cout], added in the matmul epilogue."""
    B, H, W, Cin = x.shape
    Cout, _, Kh, Kw = p["w"].shape
    sh, sw = stride
    ph, pw = padding
    dh, dw = dilation
    xb = x.astype(jnp.bfloat16)
    if Kh == 1 and Kw == 1 and stride == (1, 1) and padding == (0, 0):
        Ho, Wo = H, W
        A = xb.reshape(B * H * W, Cin)
    else:
        xp = jnp.pad(xb, ((0, 0), (ph, ph), (pw, pw), (0, 0)))
        Hp, Wp = H + 2 * ph, W + 2 * pw
        Ho = (Hp - dh * (Kh - 1) - 1) // sh + 1
        Wo = (Wp - dw * (Kw - 1) - 1) // sw + 1
        cols = []
        for kh in range(Kh):
            for kw in range(Kw):
                cols.append(xp[:, kh * dh:kh * dh + (Ho - 1) * sh + 1:sh,
                                  kw * dw:kw * dw + (Wo - 1) * sw + 1:sw, :])
        patches = jnp.stack(cols, axis=3)                 # [B, Ho, Wo, KhKw, Cin]
        A = patches.reshape(B * Ho * Wo, Kh * Kw * Cin)
    r2 = None if residual is None else residual.reshape(B * Ho * Wo, Cout)
    out = pallas_matmul(A, p["wm"], p.get("b"), act=act, residual=r2,
                        out_dtype=out_dtype)
    return out.reshape(B, Ho, Wo, Cout)


@partial(jax.jit, static_argnames=("stride", "padding", "output_padding", "act"))
def conv_transpose2d(x, p, stride=2, padding=2, output_padding=1, act="none"):
    """PyTorch nn.ConvTranspose2d (square kernel) via zero-upsample + equivalent conv.
    p['w'] already holds the flipped/transposed conv-equivalent weight [Cout, Cin, Kh, Kw]."""
    # TODO(synk): replace zero-upsample with an s^2-phase sub-pixel decomposition to
    #             skip the ~75% zero MACs in the up path.
    B, H, W, Cin = x.shape
    _, _, Kh, Kw = p["w"].shape
    s, pd, op = stride, padding, output_padding
    Hd = (H - 1) * s + 1
    Wd = (W - 1) * s + 1
    plo_h, phi_h = Kh - 1 - pd, Kh - 1 - pd + op
    plo_w, phi_w = Kw - 1 - pd, Kw - 1 - pd + op
    xd = jnp.zeros((B, Hd + plo_h + phi_h, Wd + plo_w + phi_w, Cin), jnp.bfloat16)
    xd = xd.at[:, plo_h:plo_h + Hd:s, plo_w:plo_w + Wd:s, :].set(x.astype(jnp.bfloat16))
    return conv2d(xd, p, stride=(1, 1), padding=(0, 0), dilation=(1, 1), act=act)


# ----------------------------------------------------------------------------
# Data-movement glue (exact PyTorch semantics)
# ----------------------------------------------------------------------------
def sai2macpi(x, angRes):                 # NCHW
    b, c, hu, wv = x.shape
    h, w = hu // angRes, wv // angRes
    x = x.reshape(b, c, angRes, h, angRes, w).transpose(0, 1, 3, 2, 5, 4)
    return x.reshape(b, c, hu, wv)


def macpi2sai(x, angRes):                 # NCHW
    b, c, H, W = x.shape
    h, w = H // angRes, W // angRes
    x = x.reshape(b, c, h, angRes, w, angRes).transpose(0, 1, 3, 2, 5, 4)
    return x.reshape(b, c, H, W)


def pixel_shuffle(x, r):                  # NHWC
    B, H, W, C = x.shape
    c = C // (r * r)
    x = x.reshape(B, H, W, c, r, r).transpose(0, 1, 4, 2, 5, 3)
    return x.reshape(B, H * r, W * r, c)


def pixel_shuffle_1d(x, factor):          # NHWC (upscales W)
    B, H, W, FC = x.shape
    c = FC // factor
    return x.reshape(B, H, W, factor, c).reshape(B, H, W * factor, c)


def get_2d_pos_embedding(x, angRes, embedding_dim=16, temperature=10000.0):
    b = x.shape[0]
    token_dim = embedding_dim
    grid_dim = jnp.linspace(0.0, token_dim - 1, token_dim, dtype=jnp.float32)
    grid_dim = 2.0 * jnp.floor(grid_dim / 2.0) / token_dim
    grid_dim = temperature ** grid_dim
    position = None
    for d in (2, 3):
        length = angRes
        pos_size = [1, 1, 1, 1, 1, token_dim]
        pos_size[d] = length
        pos_dim = jnp.linspace(0.0, length - 1, length, dtype=jnp.float32).reshape(-1, 1) / grid_dim
        pos_dim = jnp.concatenate([jnp.sin(pos_dim[:, 0::2]), jnp.cos(pos_dim[:, 1::2])], axis=1)
        pos_dim = pos_dim.reshape(pos_size)
        position = pos_dim if position is None else position + pos_dim
    position = position / 2.0
    pe = jnp.transpose(position[:, 0], (0, 4, 1, 2, 3))          # [1, 16, a, a, 1]
    pe1 = jnp.tile(pe, (b, 1, 1, 1, 32 * 32)).reshape(b, embedding_dim, angRes * 32, angRes * 32)
    return pe1


# ----------------------------------------------------------------------------
# Parameter construction (deterministic, in-script; weights pre-reshaped to matmul layout)
# ----------------------------------------------------------------------------
class _RNG:
    def __init__(self, seed):
        self._key = jax.random.PRNGKey(seed)

    def take(self):
        self._key, sub = jax.random.split(self._key)
        return sub


def _xavier(rng, shape, fan_in, fan_out, gain=1.0):
    a = gain * math.sqrt(6.0 / (fan_in + fan_out))
    return jax.random.uniform(rng.take(), shape, jnp.float32, -a, a)


def _conv_pack(w, bias):
    cout, cin, kh, kw = w.shape
    p = {"w": w, "wm": w.transpose(2, 3, 1, 0).reshape(kh * kw * cin, cout)}
    if bias is not None:
        p["b"] = bias
    return p


def make_conv(rng, cin, cout, kh, kw, bias=True):
    w = _xavier(rng, (cout, cin, kh, kw), cin * kh * kw, cout * kh * kw)
    b = jnp.zeros((cout,), jnp.float32) if bias else None
    return _conv_pack(w, b)


def make_linear(rng, cin, cout):
    w = _xavier(rng, (cout, cin), cin, cout)
    return {"w": w, "wm": w.T, "b": jnp.zeros((cout,), jnp.float32)}


def make_gn(c):
    return {"g": jnp.ones((c,), jnp.float32), "b": jnp.zeros((c,), jnp.float32)}


def make_disentg(rng, angRes, channels, out_ch):
    spa_c, ang_c, epi_c = channels, channels // 4, channels // 2
    p = {
        "spa1": make_conv(rng, channels, spa_c, 3, 3, bias=False),
        "spa2": make_conv(rng, spa_c, spa_c, 3, 3, bias=False),
        "ang1": make_conv(rng, channels, ang_c, angRes, angRes, bias=False),
        "ang2": make_conv(rng, ang_c, angRes * angRes * ang_c, 1, 1, bias=False),
        "epi1": make_conv(rng, channels, epi_c, 1, angRes * angRes, bias=False),
        "epi2": make_conv(rng, epi_c, angRes * epi_c, 1, 1, bias=False),
        "fuse1": make_conv(rng, spa_c + ang_c + 2 * epi_c, channels, 1, 1, bias=False),
        "fuse2": make_conv(rng, channels, out_ch, 3, 3, bias=False),
    }
    if channels != out_ch:
        p["adjust"] = make_conv(rng, channels, out_ch, 1, 1, bias=True)
    return p


def make_attnblock(rng, c):
    return {"gn": make_gn(c),
            "q": make_conv(rng, c, c, 1, 1),
            "k": make_conv(rng, c, c, 1, 1),
            "v": make_conv(rng, c, c, 1, 1),
            "proj": make_conv(rng, c, c, 1, 1)}


def make_resblock(rng, in_ch, out_ch, tdim, attn):
    p = {"gn1": make_gn(in_ch),
         "dis1": make_disentg(rng, 5, in_ch, out_ch),
         "temb": make_linear(rng, tdim, out_ch),
         "gn2": make_gn(out_ch),
         "dis2": make_disentg(rng, 5, out_ch, out_ch)}
    if in_ch != out_ch:
        p["shortcut"] = make_conv(rng, in_ch, out_ch, 1, 1, bias=True)
    if attn:
        p["attn"] = make_attnblock(rng, out_ch)
    return p


def make_down(rng, c):
    return {"c1": make_conv(rng, c, c, 3, 3), "c2": make_conv(rng, c, c, 5, 5)}


def make_up(rng, c):
    # ConvTranspose2d weight [Cin, Cout, 5, 5] -> equivalent conv weight (flipped, transposed)
    wt = _xavier(rng, (c, c, 5, 5), c * 25, c * 25)
    w_eq = jnp.flip(wt, axis=(2, 3)).transpose(1, 0, 2, 3)       # [Cout, Cin, 5, 5]
    return {"c": make_conv(rng, c, c, 3, 3),
            "t": _conv_pack(w_eq, jnp.zeros((c,), jnp.float32))}


def make_time_embedding(rng, T, d_model, dim):
    e = jnp.arange(0, d_model, 2, dtype=jnp.float32) / d_model * math.log(10000.0)
    e = jnp.exp(-e)
    pos = jnp.arange(T, dtype=jnp.float32)
    emb = pos[:, None] * e[None, :]
    emb = jnp.stack([jnp.sin(emb), jnp.cos(emb)], axis=-1).reshape(T, d_model)
    return {"table": emb, "lin1": make_linear(rng, d_model, dim),
            "lin2": make_linear(rng, dim, dim)}


def make_distg_unet(seed, T, ch, ch_mult, attn, num_res_blocks):
    rng = _RNG(seed)
    tdim = ch * 4
    params = {"time": make_time_embedding(rng, T, ch, tdim),
              "head": make_conv(rng, 3 + 3 + 16, ch, 3, 3)}
    downblocks, chs, now_ch = [], [ch], ch
    for i, mult in enumerate(ch_mult):
        out_ch = ch * mult
        for _ in range(num_res_blocks):
            downblocks.append(("res", make_resblock(rng, now_ch, out_ch, tdim, i in attn)))
            now_ch = out_ch
            chs.append(now_ch)
        if i != len(ch_mult) - 1:
            downblocks.append(("down", make_down(rng, now_ch)))
            chs.append(now_ch)
    middle = [make_resblock(rng, now_ch, now_ch, tdim, True),
              make_resblock(rng, now_ch, now_ch, tdim, False)]
    upblocks = []
    for i, mult in reversed(list(enumerate(ch_mult))):
        out_ch = ch * mult
        for _ in range(num_res_blocks + 1):
            upblocks.append(("res", make_resblock(rng, chs.pop() + now_ch, out_ch, tdim, i in attn)))
            now_ch = out_ch
        if i != 0:
            upblocks.append(("up", make_up(rng, now_ch)))
    assert len(chs) == 0
    params.update(down=downblocks, middle=middle, up=upblocks,
                  tail_gn=make_gn(now_ch),
                  tail_conv=make_conv(rng, now_ch, 3, 3, 3))
    return params


# ----------------------------------------------------------------------------
# Module forwards (all activations NHWC, bf16 intermediates)
# ----------------------------------------------------------------------------
def time_embedding_forward(p, t):
    e = p["table"][t]                                            # embedding lookup (glue)
    e = pallas_matmul(e, p["lin1"]["wm"], p["lin1"]["b"], act="swish",
                      out_dtype=jnp.float32)
    e = pallas_matmul(e, p["lin2"]["wm"], p["lin2"]["b"], out_dtype=jnp.float32)
    return e


def disentg_forward(p, x, angRes=5):
    feaSpa = conv2d(x, p["spa1"], dilation=(angRes, angRes),
                    padding=(angRes, angRes), act="leaky")
    feaSpa = conv2d(feaSpa, p["spa2"], dilation=(angRes, angRes),
                    padding=(angRes, angRes), act="leaky")
    a = conv2d(x, p["ang1"], stride=(angRes, angRes), act="leaky")
    a = conv2d(a, p["ang2"], act="leaky")
    feaAng = pixel_shuffle(a, angRes)

    def epi(z):
        e = conv2d(z, p["epi1"], stride=(1, angRes),
                   padding=(0, angRes * (angRes - 1) // 2), act="leaky")
        e = conv2d(e, p["epi2"], act="leaky")
        return pixel_shuffle_1d(e, angRes)

    feaEpiH = epi(x)
    feaEpiV = jnp.transpose(epi(jnp.transpose(x, (0, 2, 1, 3))), (0, 2, 1, 3))
    buf = jnp.concatenate([feaSpa, feaAng, feaEpiH, feaEpiV], axis=-1)
    buf = conv2d(buf, p["fuse1"], act="leaky")
    res = conv2d(x, p["adjust"]) if "adjust" in p else x        # PyTorch: buffer + (x | adjust(x))
    return conv2d(buf, p["fuse2"], dilation=(angRes, angRes),
                  padding=(angRes, angRes), residual=res)


def attnblock_forward(p, x):
    B, H, W, C = x.shape
    h = group_norm(x, p["gn"]["g"], p["gn"]["b"], swish=False)
    q = conv2d(h, p["q"]).reshape(B, H * W, C)
    k = conv2d(h, p["k"]).reshape(B, H * W, C)
    v = conv2d(h, p["v"]).reshape(B, H * W, C)
    o = pallas_attention(q, k, v, scale=float(int(C) ** (-0.5)))
    o = o.reshape(B, H, W, C)
    return conv2d(o, p["proj"], residual=x)                      # x + proj(o) fused


def resblock_forward(p, x, temb):
    h = group_norm(x, p["gn1"]["g"], p["gn1"]["b"], swish=True)
    h = disentg_forward(p["dis1"], h, 5)
    tw = temb * jax.nn.sigmoid(temb)                  # tiny Swish on [B, tdim] (glue)
    t = pallas_matmul(tw, p["temb"]["wm"], p["temb"]["b"], out_dtype=jnp.float32)
    h = h + t.astype(h.dtype)[:, None, None, :]
    h = group_norm(h, p["gn2"]["g"], p["gn2"]["b"], swish=True)
    # TODO(synk): nn.Dropout treated as eval-mode identity (no stochastic masking).
    h = disentg_forward(p["dis2"], h, 5)
    if "shortcut" in p:
        h = conv2d(x, p["shortcut"], residual=h)                 # h + shortcut(x) fused
    else:
        h = h + x
    if "attn" in p:
        h = attnblock_forward(p["attn"], h)
    return h


def down_forward(p, x):
    y = conv2d(x, p["c1"], stride=(2, 2), padding=(1, 1))
    return conv2d(x, p["c2"], stride=(2, 2), padding=(2, 2), residual=y)  # c1+c2 fused


def up_forward(p, x):
    x = conv_transpose2d(x, p["t"], stride=2, padding=2, output_padding=1)
    x = conv2d(x, p["c"], padding=(1, 1))
    return x


def distg_unet_forward(params, x, t, condition, angRes=5):
    B, _, H, W = x.shape
    # the module's get_2d_pos_embedding hard-codes a 32x32 spatial tile per view
    assert H == angRes * 32 and W == angRes * 32
    temb = time_embedding_forward(params["time"], t)
    pe = get_2d_pos_embedding(x, angRes, embedding_dim=16)
    pe = sai2macpi(pe, angRes)
    x = sai2macpi(x, angRes)
    c = sai2macpi(condition, angRes)
    x = jnp.concatenate([x, c, pe], axis=1)                       # NCHW [B, 22, H, W]
    x = jnp.transpose(x, (0, 2, 3, 1))                            # -> NHWC once
    h = conv2d(x, params["head"], dilation=(angRes, angRes), padding=(angRes, angRes))
    hs = [h]
    for kind, p in params["down"]:
        h = resblock_forward(p, h, temb) if kind == "res" else down_forward(p, h)
        hs.append(h)
    for p in params["middle"]:
        h = resblock_forward(p, h, temb)
    for kind, p in params["up"]:
        if kind == "res":
            h = jnp.concatenate([h, hs.pop()], axis=-1)
            h = resblock_forward(p, h, temb)
        else:
            h = up_forward(p, h)
    h = group_norm(h, params["tail_gn"]["g"], params["tail_gn"]["b"], swish=True)
    h = conv2d(h, params["tail_conv"], padding=(1, 1), out_dtype=jnp.float32)
    h = jnp.transpose(h, (0, 3, 1, 2))                            # NHWC -> NCHW
    h = macpi2sai(h, angRes)
    assert len(hs) == 0
    return h


# ----------------------------------------------------------------------------
if __name__ == "__main__":
    # Smallest config consistent with the module: GroupNorm(32, .) forces ch % 32 == 0,
    # the positional-embedding tiling forces 160x160 spatial (angRes=5, 32x32 views).
    T, ch, ch_mult, attn_levels, num_res_blocks = 10, 32, (1, 2), (), 1
    angRes = 5
    params = make_distg_unet(seed=1, T=T, ch=ch, ch_mult=ch_mult,
                             attn=attn_levels, num_res_blocks=num_res_blocks)

    key = jax.random.PRNGKey(0)
    k1, k2 = jax.random.split(key)
    B = 1
    H = W = angRes * 32
    x = jax.random.normal(k1, (B, 3, H, W), jnp.float32)
    condition = jax.random.normal(k2, (B, 3, H, W), jnp.float32)
    t = jnp.array([3], dtype=jnp.int32)

    out = distg_unet_forward(params, x, t, condition, angRes=angRes)
    out = jax.block_until_ready(out)
    assert out.shape == (B, 3, H, W)
    assert bool(jnp.all(jnp.isfinite(out)))
    print("KERNEL_OK")
</pallas_src>

<mosaic_0001>
module attributes {stable_mosaic.version = 11 : i64} {
  func.func @kernel(%arg0: i32, %arg1: memref<8x32xbf16, #tpu.memory_space<vmem>>, %arg2: memref<32x128xbf16, #tpu.memory_space<vmem>>, %arg3: memref<1x128xf32, #tpu.memory_space<vmem>>, %arg4: memref<8x128xf32, #tpu.memory_space<vmem>>) attributes {dimension_semantics = [#tpu.dimension_semantics<parallel>], iteration_bounds = array<i64: 1>, scalar_prefetch = 0 : i64, scratch_operands = 0 : i64, tpu.core_type = #tpu.core_type<tc>, window_params = [{transform_indices = @transform_0, window_bounds = array<i64: 8, 32>}, {pipeline_mode = #tpu.pipeline_mode<synchronous>, transform_indices = @transform_1, window_bounds = array<i64: 32, 128>}, {pipeline_mode = #tpu.pipeline_mode<synchronous>, transform_indices = @transform_2, window_bounds = array<i64: 1, 128>}, {transform_indices = @transform_3, window_bounds = array<i64: 8, 128>}]} {
    %c0 = arith.constant 0 : index
    %c0_0 = arith.constant 0 : index
    %0 = vector.load %arg1[%c0, %c0_0] : memref<8x32xbf16, #tpu.memory_space<vmem>>, vector<8x32xbf16>
    %c0_1 = arith.constant 0 : index
    %c0_2 = arith.constant 0 : index
    %1 = vector.load %arg2[%c0_1, %c0_2] : memref<32x128xbf16, #tpu.memory_space<vmem>>, vector<32x128xbf16>
    %cst = arith.constant dense<0.000000e+00> : vector<8x128xf32>
    %2 = tpu.matmul %0, %1, %cst {dimension_numbers = #tpu.dot_dimension_numbers<[1], [0], [0], [1], [0, 0, 1, 1], [], []>} : vector<8x32xbf16>, vector<32x128xbf16>, vector<8x128xf32> -> vector<8x128xf32>
    %c0_3 = arith.constant 0 : index
    %c0_4 = arith.constant 0 : index
    %3 = vector.load %arg3[%c0_3, %c0_4] : memref<1x128xf32, #tpu.memory_space<vmem>>, vector<1x128xf32>
    %4 = vector.broadcast %3 : vector<1x128xf32> to vector<8x128xf32>
    %5 = arith.addf %2, %4 : vector<8x128xf32>
    %6 = arith.negf %5 : vector<8x128xf32>
    %7 = math.exp %6 : vector<8x128xf32>
    %cst_5 = arith.constant 1.000000e+00 : f32
    %8 = vector.broadcast %cst_5 : f32 to vector<8x128xf32>
    %9 = arith.addf %8, %7 : vector<8x128xf32>
    %10 = arith.divf %8, %9 : vector<8x128xf32>
    %11 = arith.mulf %5, %10 : vector<8x128xf32>
    %c0_6 = arith.constant 0 : index
    %c0_7 = arith.constant 0 : index
    %12 = vector.load %arg4[%c0_6, %c0_7] : memref<8x128xf32, #tpu.memory_space<vmem>>, vector<8x128xf32>
    tpu.vector_store %arg4[%c0_6, %c0_7], %11 {strides = array<i32>} : memref<8x128xf32, #tpu.memory_space<vmem>>, vector<8x128xf32>,
    return
  }
  func.func @transform_0(%arg0: i32) -> (i32, i32) {
    %c0_i32 = arith.constant 0 : i32
    %c0_i32_0 = arith.constant 0 : i32
    return %arg0, %c0_i32 : i32, i32
  }
  func.func @transform_1(%arg0: i32) -> (i32, i32) {
    %c0_i32 = arith.constant 0 : i32
    %c0_i32_0 = arith.constant 0 : i32
    %c0_i32_1 = arith.constant 0 : i32
    return %c0_i32, %c0_i32_0 : i32, i32
  }
  func.func @transform_2(%arg0: i32) -> (i32, i32) {
    %c0_i32 = arith.constant 0 : i32
    %c0_i32_0 = arith.constant 0 : i32
    %c0_i32_1 = arith.constant 0 : i32
    return %c0_i32, %c0_i32_0 : i32, i32
  }
  func.func @transform_3(%arg0: i32) -> (i32, i32) {
    %c0_i32 = arith.constant 0 : i32
    %c0_i32_0 = arith.constant 0 : i32
    return %arg0, %c0_i32 : i32, i32
  }
}

</mosaic_0001>

<llo_original>
// kernel: pallas_matmul.1
$region0: #{pallas_matmul.1}
  #allocation0 [shape = 'u32[]', space=smem, size = 0x4, offset = 0x4, fixed_abs, tag = 'smem constant byte address 0x4 - core index']
  #allocation1 [shape = 'u32[144,128]{1,0:T(1,128)}', space=vmem, size = 0x12000, scoped, tag = 'internal scratch']
  %s0 = inlined_call_operand.vmem [shape: bf16[8,32], index: 0, kind: input, shape index: {}]
  %s1 = inlined_call_operand.vmem [shape: bf16[32,128], index: 1, kind: input, shape index: {}]
  %s2 = inlined_call_operand.vmem [shape: f32[1,128], index: 2, kind: input, shape index: {}]
  %s3 = inlined_call_operand.vmem [shape: f32[8,128], index: 3, kind: output, shape index: {}]
  %s4 = sld [smem:[#allocation0]]
  $region22: #{pallas_matmul.1} parent=0
    _
  %s6 = ssub.s32 1, %s4
  %s7 = scalar_select 0, %s6, %s4
  // Predicated region
  $region2: #{pallas_matmul.1} parent=0 // pred_check
    _
  $region3: #{pallas_matmul.1} parent=0 // pred_check_branch
    %9 = sbr.rel (0) target = $region5
  $region4: #{pallas_matmul.1} parent=0 // pred_region
    _
  $region5: #{pallas_matmul.1} parent=0 // pred_fallthru
    _
  // Predicated region
  $region6: #{pallas_matmul.1} parent=0 // pred_check
    _
  $region7: #{pallas_matmul.1} parent=0 // pred_check_branch
    %11 = sbr.rel (0) target = $region9
  $region8: #{pallas_matmul.1} parent=0 // pred_region
    _
  $region9: #{pallas_matmul.1} parent=0 // pred_fallthru
    _
  // Predicated region
  $region10: #{pallas_matmul.1} parent=0 // pred_check
    _
  $region11: #{pallas_matmul.1} parent=0 // pred_check_branch
    %13 = sbr.rel (0) target = $region13
  $region12: #{pallas_matmul.1} parent=0 // pred_region
    _
  $region13: #{pallas_matmul.1} parent=0 // pred_fallthru
    _
  %v15 = vld [vmem:[%s0] sm:$0xf]
  %v16 = vld [vmem:[%s1] sm:$0xf]
  %v17 = vld [vmem:[%s1 + $0x4] sm:$0xf]
  %v18 = vld [vmem:[%s1 + $0x8] sm:$0xf]
  %v19 = vld [vmem:[%s1 + $0xc] sm:$0xf]
  %v20 = vld [vmem:[%s2] sm:$0x1]
  %v22 = vlaneseq
  %v23 = vshrl.u32 %v22, 7
  %v24 = vsub.s32 0, %v23
  %v25 = vrot.slane %v20, %v24
  %v31 = vunpack.c.l.b16 %v16
  %v32 = vunpack.c.l.b16 %v17
  %v33 = vunpack.c.l.b16 %v18
  %v34 = vunpack.c.l.b16 %v19
  %v35 = vpack.c.b16 %v32, %v31
  %v36 = vpack.c.b16 %v34, %v33
  %vm39 = vcmask 261120
  %v41 = vsel %vm39, %v15, 0
  %43 = vmatprep.subr.bf16.mxu0 0
  %44 = vmatpush1.bf16.msra.mxu0 0
  %45 = vmatprep.subr.bf16.mxu0 0
  %46 = vmatpush1.bf16.msra.mxu0 0
  %47 = vmatprep.subr.bf16.mxu0 0
  %48 = vmatpush1.bf16.msra.mxu0 0
  %49 = vmatprep.subr.bf16.mxu0 0
  %50 = vmatpush1.bf16.msra.mxu0 0
  %51 = vmatprep.subr.bf16.mxu0 0
  %52 = vmatpush1.bf16.msra.mxu0 0
  %53 = vmatprep.subr.bf16.mxu0 0
  %54 = vmatpush1.bf16.msra.mxu0 0
  %55 = vmatprep.subr.bf16.mxu0 0
  %56 = vmatpush1.bf16.msra.mxu0 %v36
  %57 = vmatprep.subr.bf16.mxu0 0
  %58 = vmatpush1.bf16.msra.mxu0 %v35
  %59 = vmatprep.subr.bf16.mxu0 0
  %60 = vmatpush2.bf16.msra.mxu0 0
  %61 = vmatprep.subr.bf16.mxu0 0
  %62 = vmatpush2.bf16.msra.mxu0 0
  %63 = vmatprep.subr.bf16.mxu0 0
  %64 = vmatpush2.bf16.msra.mxu0 0
  %65 = vmatprep.subr.bf16.mxu0 0
  %66 = vmatpush2.bf16.msra.mxu0 0
  %67 = vmatprep.subr.bf16.mxu0 0
  %68 = vmatpush2.bf16.msra.mxu0 0
  %69 = vmatprep.subr.bf16.mxu0 0
  %70 = vmatpush2.bf16.msra.mxu0 0
  %71 = vmatprep.subr.bf16.mxu0 0
  %72 = vmatpush2.bf16.msra.mxu0 0
  %73 = vmatprep.subr.bf16.mxu0 0
  %74 = vmatpush2.bf16.msra.mxu0 0
  %75 = vmatprep.mubr.bf16.mxu0 0
  %76 = vmatmul.mubr.bf16.gmra.mxu0 %v41
  %v77 = vpop.f32.mrf.mxu0
  %v78 = vadd.f32 %v25, %v77
  %v79 = vpop.f32.mrf.mxu0
  %v80 = vpop.f32.mrf.mxu0
  %v81 = vpop.f32.mrf.mxu0
  %82 = vdwg.mxu0
  %v83 = vxor.u32 %v78, 2147483648
  %v84 = vmul.f32 %v83, 1.442695
  %v85 = vpow.pop %v84
  %v86 = vadd.f32 %v85, 1.0
  %v87 = vrcp.pop %v86
  %v88 = vmul.f32 1.0, %v87
  %v89 = vmul.f32 %v78, %v88
  %90 = vst [vmem:[%s3] sm:$0xff] %v89
  // Predicated region
  $region14: #{pallas_matmul.1} parent=0 // pred_check
    _
  $region15: #{pallas_matmul.1} parent=0 // pred_check_branch
    %92 = sbr.rel (0) target = $region17
  $region16: #{pallas_matmul.1} parent=0 // pred_region
    _
  $region17: #{pallas_matmul.1} parent=0 // pred_fallthru
    _
  // Predicated region
  $region18: #{pallas_matmul.1} parent=0 // pred_check
    _
  $region19: #{pallas_matmul.1} parent=0 // pred_check_branch
    %94 = sbr.rel (0) target = $region21
  $region20: #{pallas_matmul.1} parent=0 // pred_region
    _
  $region21: #{pallas_matmul.1} parent=0 // pred_fallthru
    _

</llo_original>
